<compile_context>
chip_gen: v7x
topology: tpu7x:2x2x1
jax: 0.10.0
libtpu: 0.0.40
codegen_flags: <defaults>
</compile_context>

<pallas_src>
import functools
import math

import jax
import jax.numpy as jnp
from jax import lax
from jax.experimental import pallas as pl
from jax.experimental.pallas import tpu as pltpu


NEG_LOG_SQRT_2PI = -math.log(math.sqrt(2.0 * math.pi))


def _round_up(n, m):
    return ((n + m - 1) // m) * m


def _softplus(x):
    # Numerically stable softplus: max(x, 0) + log1p(exp(-|x|)).
    return jnp.maximum(x, 0.0) + jnp.log1p(jnp.exp(-jnp.abs(x)))


def _bayes_linear_kernel(x_ref, wmu_ref, wrho_ref, weps_ref,
                         bmu_ref, brho_ref, beps_ref,
                         y_ref, logvp_ref, *, out_f, in_f):
    i = pl.program_id(0)
    tile_out, in_pad = wmu_ref.shape

    # ---- sample weight tile: W = mu + softplus(rho) * eps (VPU/EUP) ----
    wmu = wmu_ref[...]
    weps = weps_ref[...]
    wsigma = _softplus(wrho_ref[...])
    w = wmu + wsigma * weps

    # ---- sample bias tile (kept (1, tile_out) for lane layout) ----
    bmu = bmu_ref[...]
    beps = beps_ref[...]
    bsigma = _softplus(brho_ref[...])
    b = bmu + bsigma * beps

    # ---- linear: y = x @ W.T + b, contraction on `in` without materializing W.T (MXU) ----
    y = lax.dot_general(
        x_ref[...], w,
        dimension_numbers=(((1,), (1,)), ((), ())),
        preferred_element_type=jnp.float32,
    )
    y_ref[...] = (y + b).astype(y_ref.dtype)

    # ---- log variational posterior (simplified: (w - mu)^2 / (2 sigma^2) == eps^2 / 2) ----
    # Mask out the zero-padded rows/cols so padding does not contribute to the sum.
    row0 = i * tile_out
    rows = lax.broadcasted_iota(jnp.int32, (tile_out, in_pad), 0) + row0
    cols = lax.broadcasted_iota(jnp.int32, (tile_out, in_pad), 1)
    w_valid = (rows < out_f) & (cols < in_f)
    lp_w_elems = NEG_LOG_SQRT_2PI - jnp.log(wsigma) - 0.5 * weps * weps
    lp_w = jnp.where(w_valid, lp_w_elems, 0.0).sum()

    bcols = lax.broadcasted_iota(jnp.int32, (1, tile_out), 1) + row0
    b_valid = bcols < out_f
    lp_b_elems = NEG_LOG_SQRT_2PI - jnp.log(bsigma) - 0.5 * beps * beps
    lp_b = jnp.where(b_valid, lp_b_elems, 0.0).sum()

    # logvp output block index is constant across the grid -> resident accumulator.
    @pl.when(i == 0)
    def _():
        logvp_ref[...] = jnp.zeros_like(logvp_ref)

    logvp_ref[...] += lp_w + lp_b


def bayesian_linear_forward(x, weight_mu, weight_rho, eps_w,
                            bias_mu, bias_rho, eps_b, *, tile_out=256):
    """BayesianLinear forward (sample=True) in one tiled Pallas kernel.

    x:        [B, in_features]           float32
    weight_*: [out_features, in_features] float32
    eps_w:    [out_features, in_features] float32 (standard-normal noise)
    bias_*:   [out_features]              float32
    eps_b:    [out_features]              float32
    Returns (y [B, out_features], log_variational_posterior scalar).
    """
    B, in_f = x.shape
    out_f = weight_mu.shape[0]

    # Lane/sublane-dense padded shapes.
    b_pad = _round_up(B, 8)
    in_pad = _round_up(in_f, 128)
    out_pad = _round_up(out_f, 128)
    tile_out = min(tile_out, out_pad)
    out_pad = _round_up(out_pad, tile_out)
    num_tiles = out_pad // tile_out

    f32 = jnp.float32
    xp = jnp.pad(x.astype(f32), ((0, b_pad - B), (0, in_pad - in_f)))
    wmu_p = jnp.pad(weight_mu.astype(f32), ((0, out_pad - out_f), (0, in_pad - in_f)))
    wrho_p = jnp.pad(weight_rho.astype(f32), ((0, out_pad - out_f), (0, in_pad - in_f)))
    weps_p = jnp.pad(eps_w.astype(f32), ((0, out_pad - out_f), (0, in_pad - in_f)))
    bmu_p = jnp.pad(bias_mu.astype(f32), (0, out_pad - out_f)).reshape(1, out_pad)
    brho_p = jnp.pad(bias_rho.astype(f32), (0, out_pad - out_f)).reshape(1, out_pad)
    beps_p = jnp.pad(eps_b.astype(f32), (0, out_pad - out_f)).reshape(1, out_pad)

    kernel = functools.partial(_bayes_linear_kernel, out_f=out_f, in_f=in_f)

    w_spec = pl.BlockSpec((tile_out, in_pad), lambda i: (i, 0))
    b_spec = pl.BlockSpec((1, tile_out), lambda i: (0, i))

    y_pad, logvp = pl.pallas_call(
        kernel,
        grid=(num_tiles,),
        in_specs=[
            pl.BlockSpec((b_pad, in_pad), lambda i: (0, 0)),   # x (resident)
            w_spec, w_spec, w_spec,                            # weight mu / rho / eps
            b_spec, b_spec, b_spec,                            # bias mu / rho / eps
        ],
        out_specs=(
            pl.BlockSpec((b_pad, tile_out), lambda i: (0, i)),  # y tile
            pl.BlockSpec((1, 1), lambda i: (0, 0)),             # logvp accumulator
        ),
        out_shape=(
            jax.ShapeDtypeStruct((b_pad, out_pad), jnp.float32),
            jax.ShapeDtypeStruct((1, 1), jnp.float32),
        ),
        compiler_params=pltpu.CompilerParams(
            dimension_semantics=("arbitrary",),  # logvp block is revisited across the axis
        ),
        cost_estimate=pl.CostEstimate(
            flops=2 * b_pad * out_pad * in_pad + 10 * out_pad * in_pad,
            transcendentals=3 * out_pad * (in_pad + 1),
            bytes_accessed=4 * (3 * out_pad * in_pad + b_pad * in_pad
                                + b_pad * out_pad + 3 * out_pad + 1),
        ),
    )(xp, wmu_p, wrho_p, weps_p, bmu_p, brho_p, beps_p)

    return y_pad[:B, :out_f], logvp[0, 0]


def _reference_forward(x, weight_mu, weight_rho, eps_w, bias_mu, bias_rho, eps_b):
    # Mirrors the PyTorch module exactly (original, un-simplified formulation).
    wsigma = jnp.log1p(jnp.exp(weight_rho))
    w = weight_mu + wsigma * eps_w
    bsigma = jnp.log1p(jnp.exp(bias_rho))
    b = bias_mu + bsigma * eps_b
    y = x @ w.T + b
    lp_w = (NEG_LOG_SQRT_2PI - jnp.log(wsigma)
            - (w - weight_mu) ** 2 / (2.0 * wsigma ** 2)).sum()
    lp_b = (NEG_LOG_SQRT_2PI - jnp.log(bsigma)
            - (b - bias_mu) ** 2 / (2.0 * bsigma ** 2)).sum()
    return y, lp_w + lp_b


if __name__ == "__main__":
    # Small shapes consistent with a Linear layer of a FashionMNIST BBB MLP.
    batch = 8
    in_features = 32
    out_features = 16

    key = jax.random.PRNGKey(0)
    k_x, k_wmu, k_wrho, k_bmu, k_brho, k_ew, k_eb = jax.random.split(key, 7)

    # Parameter "init" mirroring the module's __init__:
    #   weight_mu, bias_mu ~ U(-0.2, 0.2); weight_rho, bias_rho ~ U(-5, -4)
    x = jax.random.normal(k_x, (batch, in_features), dtype=jnp.float32)
    weight_mu = jax.random.uniform(k_wmu, (out_features, in_features),
                                   minval=-0.2, maxval=0.2, dtype=jnp.float32)
    weight_rho = jax.random.uniform(k_wrho, (out_features, in_features),
                                    minval=-5.0, maxval=-4.0, dtype=jnp.float32)
    bias_mu = jax.random.uniform(k_bmu, (out_features,),
                                 minval=-0.2, maxval=0.2, dtype=jnp.float32)
    bias_rho = jax.random.uniform(k_brho, (out_features,),
                                  minval=-5.0, maxval=-4.0, dtype=jnp.float32)
    # Reparameterization noise (the module samples it inside forward; passed in here so the
    # kernel is deterministic / comparable to the reference).
    eps_w = jax.random.normal(k_ew, (out_features, in_features), dtype=jnp.float32)
    eps_b = jax.random.normal(k_eb, (out_features,), dtype=jnp.float32)

    y, logvp = bayesian_linear_forward(
        x, weight_mu, weight_rho, eps_w, bias_mu, bias_rho, eps_b)
    jax.block_until_ready((y, logvp))

    y_ref, logvp_ref = _reference_forward(
        x, weight_mu, weight_rho, eps_w, bias_mu, bias_rho, eps_b)

    assert y.shape == (batch, out_features)
    assert jnp.allclose(y, y_ref, atol=1e-5, rtol=1e-5), "y mismatch"
    assert jnp.allclose(logvp, logvp_ref, atol=1e-2, rtol=1e-4), "logvp mismatch"

    print("KERNEL_OK")
</pallas_src>

<mosaic_0001>
module attributes {stable_mosaic.version = 11 : i64} {
  func.func @_bayes_linear_kernel(%arg0: i32, %arg1: memref<8x128xf32, #tpu.memory_space<vmem>>, %arg2: memref<128x128xf32, #tpu.memory_space<vmem>>, %arg3: memref<128x128xf32, #tpu.memory_space<vmem>>, %arg4: memref<128x128xf32, #tpu.memory_space<vmem>>, %arg5: memref<1x128xf32, #tpu.memory_space<vmem>>, %arg6: memref<1x128xf32, #tpu.memory_space<vmem>>, %arg7: memref<1x128xf32, #tpu.memory_space<vmem>>, %arg8: memref<8x128xf32, #tpu.memory_space<vmem>>, %arg9: memref<1x1xf32, #tpu.memory_space<vmem>>) attributes {dimension_semantics = [#tpu.dimension_semantics<arbitrary>], iteration_bounds = array<i64: 1>, scalar_prefetch = 0 : i64, scratch_operands = 0 : i64, tpu.core_type = #tpu.core_type<tc>, window_params = [{pipeline_mode = #tpu.pipeline_mode<synchronous>, transform_indices = @transform_0, window_bounds = array<i64: 8, 128>}, {transform_indices = @transform_1, window_bounds = array<i64: 128, 128>}, {transform_indices = @transform_2, window_bounds = array<i64: 128, 128>}, {transform_indices = @transform_3, window_bounds = array<i64: 128, 128>}, {transform_indices = @transform_4, window_bounds = array<i64: 1, 128>}, {transform_indices = @transform_5, window_bounds = array<i64: 1, 128>}, {transform_indices = @transform_6, window_bounds = array<i64: 1, 128>}, {transform_indices = @transform_7, window_bounds = array<i64: 8, 128>}, {pipeline_mode = #tpu.pipeline_mode<synchronous>, transform_indices = @transform_8, window_bounds = array<i64: 1, 1>}]} {
    %c0 = arith.constant 0 : index
    %c0_0 = arith.constant 0 : index
    %0 = vector.load %arg2[%c0, %c0_0] : memref<128x128xf32, #tpu.memory_space<vmem>>, vector<128x128xf32>
    %c0_1 = arith.constant 0 : index
    %c0_2 = arith.constant 0 : index
    %1 = vector.load %arg4[%c0_1, %c0_2] : memref<128x128xf32, #tpu.memory_space<vmem>>, vector<128x128xf32>
    %c0_3 = arith.constant 0 : index
    %c0_4 = arith.constant 0 : index
    %2 = vector.load %arg3[%c0_3, %c0_4] : memref<128x128xf32, #tpu.memory_space<vmem>>, vector<128x128xf32>
    %cst = arith.constant 0.000000e+00 : f32
    %3 = vector.broadcast %cst : f32 to vector<128x128xf32>
    %4 = arith.maximumf %2, %3 : vector<128x128xf32>
    %5 = math.absf %2 : vector<128x128xf32>
    %cst_5 = arith.constant 0.000000e+00 : f32
    %6 = vector.broadcast %cst_5 : f32 to vector<128x128xf32>
    %7 = arith.subf %6, %5 : vector<128x128xf32>
    %8 = math.exp %7 : vector<128x128xf32>
    %9 = math.log1p %8 : vector<128x128xf32>
    %10 = arith.addf %4, %9 : vector<128x128xf32>
    %11 = arith.mulf %10, %1 : vector<128x128xf32>
    %12 = arith.addf %0, %11 : vector<128x128xf32>
    %c0_6 = arith.constant 0 : index
    %c0_7 = arith.constant 0 : index
    %13 = vector.load %arg5[%c0_6, %c0_7] : memref<1x128xf32, #tpu.memory_space<vmem>>, vector<1x128xf32>
    %c0_8 = arith.constant 0 : index
    %c0_9 = arith.constant 0 : index
    %14 = vector.load %arg7[%c0_8, %c0_9] : memref<1x128xf32, #tpu.memory_space<vmem>>, vector<1x128xf32>
    %c0_10 = arith.constant 0 : index
    %c0_11 = arith.constant 0 : index
    %15 = vector.load %arg6[%c0_10, %c0_11] : memref<1x128xf32, #tpu.memory_space<vmem>>, vector<1x128xf32>
    %cst_12 = arith.constant 0.000000e+00 : f32
    %16 = vector.broadcast %cst_12 : f32 to vector<1x128xf32>
    %17 = arith.maximumf %15, %16 : vector<1x128xf32>
    %18 = math.absf %15 : vector<1x128xf32>
    %cst_13 = arith.constant 0.000000e+00 : f32
    %19 = vector.broadcast %cst_13 : f32 to vector<1x128xf32>
    %20 = arith.subf %19, %18 : vector<1x128xf32>
    %21 = math.exp %20 : vector<1x128xf32>
    %22 = math.log1p %21 : vector<1x128xf32>
    %23 = arith.addf %17, %22 : vector<1x128xf32>
    %24 = arith.mulf %23, %14 : vector<1x128xf32>
    %25 = arith.addf %13, %24 : vector<1x128xf32>
    %c0_14 = arith.constant 0 : index
    %c0_15 = arith.constant 0 : index
    %26 = vector.load %arg1[%c0_14, %c0_15] : memref<8x128xf32, #tpu.memory_space<vmem>>, vector<8x128xf32>
    %cst_16 = arith.constant dense<0.000000e+00> : vector<8x128xf32>
    %27 = tpu.matmul %26, %12, %cst_16 {dimension_numbers = #tpu.dot_dimension_numbers<[1], [1], [0], [0], [0, 0, 1, 0], [], []>} : vector<8x128xf32>, vector<128x128xf32>, vector<8x128xf32> -> vector<8x128xf32>
    %28 = vector.broadcast %25 : vector<1x128xf32> to vector<8x128xf32>
    %29 = arith.addf %27, %28 : vector<8x128xf32>
    %c0_17 = arith.constant 0 : index
    %c0_18 = arith.constant 0 : index
    %30 = vector.load %arg8[%c0_17, %c0_18] : memref<8x128xf32, #tpu.memory_space<vmem>>, vector<8x128xf32>
    tpu.vector_store %arg8[%c0_17, %c0_18], %29 {strides = array<i32>} : memref<8x128xf32, #tpu.memory_space<vmem>>, vector<8x128xf32>,
    %c128_i32 = arith.constant 128 : i32
    %31 = arith.muli %arg0, %c128_i32 : i32
    %32 = tpu.iota {dimensions = array<i32: 0>} : vector<128x128xi32>
    %33 = vector.broadcast %31 : i32 to vector<128x128xi32>
    %34 = arith.addi %32, %33 : vector<128x128xi32>
    %35 = tpu.iota {dimensions = array<i32: 1>} : vector<128x128xi32>
    %c16_i32 = arith.constant 16 : i32
    %36 = vector.broadcast %c16_i32 : i32 to vector<128x128xi32>
    %37 = arith.cmpi slt, %34, %36 : vector<128x128xi32>
    %c32_i32 = arith.constant 32 : i32
    %38 = vector.broadcast %c32_i32 : i32 to vector<128x128xi32>
    %39 = arith.cmpi slt, %35, %38 : vector<128x128xi32>
    %40 = arith.andi %37, %39 : vector<128x128xi1>
    %41 = math.log %10 : vector<128x128xf32>
    %cst_19 = arith.constant -0.918938517 : f32
    %42 = vector.broadcast %cst_19 : f32 to vector<128x128xf32>
    %43 = arith.subf %42, %41 : vector<128x128xf32>
    %cst_20 = arith.constant 5.000000e-01 : f32
    %44 = vector.broadcast %cst_20 : f32 to vector<128x128xf32>
    %45 = arith.mulf %44, %1 : vector<128x128xf32>
    %46 = arith.mulf %45, %1 : vector<128x128xf32>
    %47 = arith.subf %43, %46 : vector<128x128xf32>
    %cst_21 = arith.constant 0.000000e+00 : f32
    %48 = vector.broadcast %cst_21 : f32 to vector<128x128xf32>
    %49 = arith.select %40, %47, %48 : vector<128x128xi1>, vector<128x128xf32>
    %50 = vector.shape_cast %49 : vector<128x128xf32> to vector<1x128x128xf32>
    %cst_22 = arith.constant dense<0.000000e+00> : vector<1xf32>
    %51 = vector.multi_reduction <add>, %50, %cst_22 [1, 2] : vector<1x128x128xf32> to vector<1xf32>
    %52 = vector.shape_cast %51 : vector<1xf32> to vector<1x1x1xf32>
    %53 = vector.extract %52[0, 0, 0] : f32 from vector<1x1x1xf32>
    %54 = tpu.iota {dimensions = array<i32: 1>} : vector<1x128xi32>
    %55 = vector.broadcast %31 : i32 to vector<1x128xi32>
    %56 = arith.addi %54, %55 : vector<1x128xi32>
    %c16_i32_23 = arith.constant 16 : i32
    %57 = vector.broadcast %c16_i32_23 : i32 to vector<1x128xi32>
    %58 = arith.cmpi slt, %56, %57 : vector<1x128xi32>
    %59 = math.log %23 : vector<1x128xf32>
    %cst_24 = arith.constant -0.918938517 : f32
    %60 = vector.broadcast %cst_24 : f32 to vector<1x128xf32>
    %61 = arith.subf %60, %59 : vector<1x128xf32>
    %cst_25 = arith.constant 5.000000e-01 : f32
    %62 = vector.broadcast %cst_25 : f32 to vector<1x128xf32>
    %63 = arith.mulf %62, %14 : vector<1x128xf32>
    %64 = arith.mulf %63, %14 : vector<1x128xf32>
    %65 = arith.subf %61, %64 : vector<1x128xf32>
    %cst_26 = arith.constant 0.000000e+00 : f32
    %66 = vector.broadcast %cst_26 : f32 to vector<1x128xf32>
    %67 = arith.select %58, %65, %66 : vector<1x128xi1>, vector<1x128xf32>
    %68 = vector.shape_cast %67 : vector<1x128xf32> to vector<1x1x128xf32>
    %cst_27 = arith.constant dense<0.000000e+00> : vector<1xf32>
    %69 = vector.multi_reduction <add>, %68, %cst_27 [1, 2] : vector<1x1x128xf32> to vector<1xf32>
    %70 = vector.shape_cast %69 : vector<1xf32> to vector<1x1x1xf32>
    %71 = vector.extract %70[0, 0, 0] : f32 from vector<1x1x1xf32>
    %c0_i32 = arith.constant 0 : i32
    %72 = arith.cmpi eq, %arg0, %c0_i32 : i32
    %73 = arith.extui %72 : i1 to i32
    %c0_i32_28 = arith.constant 0 : i32
    %74 = arith.cmpi ne, %73, %c0_i32_28 : i32
    scf.if %74 {
      %cst_33 = arith.constant 0.000000e+00 : f32
      %80 = vector.broadcast %cst_33 : f32 to vector<1x1xf32>
      %c0_34 = arith.constant 0 : index
      %c0_35 = arith.constant 0 : index
      %81 = vector.load %arg9[%c0_34, %c0_35] : memref<1x1xf32, #tpu.memory_space<vmem>>, vector<1x1xf32>
      tpu.vector_store %arg9[%c0_34, %c0_35], %80 {strides = array<i32>} : memref<1x1xf32, #tpu.memory_space<vmem>>, vector<1x1xf32>,
    } else {
    }
    %c0_29 = arith.constant 0 : index
    %c0_30 = arith.constant 0 : index
    %75 = vector.load %arg9[%c0_29, %c0_30] : memref<1x1xf32, #tpu.memory_space<vmem>>, vector<1x1xf32>
    %76 = arith.addf %53, %71 : f32
    %77 = vector.broadcast %76 : f32 to vector<1x1xf32>
    %78 = arith.addf %75, %77 : vector<1x1xf32>
    %c0_31 = arith.constant 0 : index
    %c0_32 = arith.constant 0 : index
    %79 = vector.load %arg9[%c0_31, %c0_32] : memref<1x1xf32, #tpu.memory_space<vmem>>, vector<1x1xf32>
    tpu.vector_store %arg9[%c0_31, %c0_32], %78 {strides = array<i32>} : memref<1x1xf32, #tpu.memory_space<vmem>>, vector<1x1xf32>,
    return
  }
  func.func @transform_0(%arg0: i32) -> (i32, i32) {
    %c0_i32 = arith.constant 0 : i32
    %c0_i32_0 = arith.constant 0 : i32
    %c0_i32_1 = arith.constant 0 : i32
    return %c0_i32, %c0_i32_0 : i32, i32
  }
  func.func @transform_1(%arg0: i32) -> (i32, i32) {
    %c0_i32 = arith.constant 0 : i32
    %c0_i32_0 = arith.constant 0 : i32
    return %arg0, %c0_i32 : i32, i32
  }
  func.func @transform_2(%arg0: i32) -> (i32, i32) {
    %c0_i32 = arith.constant 0 : i32
    %c0_i32_0 = arith.constant 0 : i32
    return %arg0, %c0_i32 : i32, i32
  }
  func.func @transform_3(%arg0: i32) -> (i32, i32) {
    %c0_i32 = arith.constant 0 : i32
    %c0_i32_0 = arith.constant 0 : i32
    return %arg0, %c0_i32 : i32, i32
  }
  func.func @transform_4(%arg0: i32) -> (i32, i32) {
    %c0_i32 = arith.constant 0 : i32
    %c0_i32_0 = arith.constant 0 : i32
    return %c0_i32, %arg0 : i32, i32
  }
  func.func @transform_5(%arg0: i32) -> (i32, i32) {
    %c0_i32 = arith.constant 0 : i32
    %c0_i32_0 = arith.constant 0 : i32
    return %c0_i32, %arg0 : i32, i32
  }
  func.func @transform_6(%arg0: i32) -> (i32, i32) {
    %c0_i32 = arith.constant 0 : i32
    %c0_i32_0 = arith.constant 0 : i32
    return %c0_i32, %arg0 : i32, i32
  }
  func.func @transform_7(%arg0: i32) -> (i32, i32) {
    %c0_i32 = arith.constant 0 : i32
    %c0_i32_0 = arith.constant 0 : i32
    return %c0_i32, %arg0 : i32, i32
  }
  func.func @transform_8(%arg0: i32) -> (i32, i32) {
    %c0_i32 = arith.constant 0 : i32
    %c0_i32_0 = arith.constant 0 : i32
    %c0_i32_1 = arith.constant 0 : i32
    return %c0_i32, %c0_i32_0 : i32, i32
  }
}

</mosaic_0001>

<llo_original>
// kernel: tpu_custom_call.1
$region0: #{tpu_custom_call.1}
  #allocation0 [shape = 'u32[]', space=smem, size = 0x4, offset = 0x4, fixed_abs, tag = 'smem constant byte address 0x4 - core index']
  #allocation1 [shape = 'u32[144,128]{1,0:T(1,128)}', space=vmem, size = 0x12000, scoped, tag = 'internal scratch']
  %s0 = inlined_call_operand.hbm [shape: f32[8,128], index: 0, kind: input, shape index: {}]
  %s1 = inlined_call_operand.hbm [shape: f32[128,128], index: 1, kind: input, shape index: {}]
  %s2 = inlined_call_operand.hbm [shape: f32[128,128], index: 2, kind: input, shape index: {}]
  %s3 = inlined_call_operand.hbm [shape: f32[128,128], index: 3, kind: input, shape index: {}]
  %s4 = inlined_call_operand.vmem [shape: f32[1,128], index: 4, kind: input, shape index: {}]
  %s5 = inlined_call_operand.vmem [shape: f32[1,128], index: 5, kind: input, shape index: {}]
  %s6 = inlined_call_operand.vmem [shape: f32[1,128], index: 6, kind: input, shape index: {}]
  %s7 = inlined_call_operand.hbm [shape: f32[8,128], index: 7, kind: output, shape index: {0}]
  %s8 = inlined_call_operand.hbm [shape: f32[1,1], index: 8, kind: output, shape index: {1}]
  %9 = xla_tuple %s7, %s8
  %s10 = sld [smem:[#allocation0]]
  $region66: #{tpu_custom_call.1} parent=0
    _
  %s12 = ssub.s32 1, %s10
  %s13 = scalar_select 0, %s12, %s10
  $region1: #{tpu_custom_call.1} parent=0
    #allocation2 [shape = 'u8[4096]{0}', space=vmem, size = 0x1000, scoped, tag = 'input window, operand 0, single buffered']
    #allocation3 [shape = 's32[1]{0}', space=sflag, size = 0x4, scoped, tag = 'scoped memory for tpu_custom_call.1']
    #allocation4 [shape = 's32[1]{0}', space=sflag, size = 0x4, scoped, tag = 'scoped memory for tpu_custom_call.1']
    #allocation5 [shape = 'u8[65536]{0}', space=vmem, size = 0x10000, scoped, tag = 'input window, operand 1, single buffered']
    #allocation6 [shape = 's32[1]{0}', space=sflag, size = 0x4, scoped, tag = 'scoped memory for tpu_custom_call.1']
    #allocation7 [shape = 'u8[65536]{0}', space=vmem, size = 0x10000, scoped, tag = 'input window, operand 2, single buffered']
    #allocation8 [shape = 'u8[65536]{0}', space=vmem, size = 0x10000, scoped, tag = 'input window, operand 3, single buffered']
    #allocation9 [shape = 's32[1]{0}', space=sflag, size = 0x4, scoped, tag = 'scoped memory for tpu_custom_call.1']
    #allocation10 [shape = 'u8[4096]{0}', space=vmem, size = 0x1000, scoped, tag = 'output window, operand 0, single buffered']
    #allocation11 [shape = 'u8[512]{0}', space=vmem, size = 0x400, scoped, tag = 'output window, operand 1, single buffered']
    #allocation12 [shape = 's32[1]{0}', space=sflag, size = 0x4, scoped, tag = 'scoped memory for tpu_custom_call.1']
    %14 = vsyncpa [#allocation3], 0
    %15 = vsyncpa [#allocation6], 0
    %16 = vsyncpa [#allocation9], 0
    %17 = vsyncpa [#allocation4], 0
    %18 = vsyncpa [#allocation12], 0
    // Predicated region
    $region2: #{tpu_custom_call.1} parent=1 // pred_check
      _
    $region3: #{tpu_custom_call.1} parent=1 // pred_check_branch
      %20 = sbr.rel (0) target = $region5
    $region4: #{tpu_custom_call.1} parent=1 // pred_region
      %s22 = ssub.s32 128, 128
      %23 = vsyncadd [#allocation3], %s22
      %s25 = sshll.u32 [#allocation2], 4
      %s26 = int_to_ptr.vmem [resolvable:$true] %s25
      %28 = dma.hbm_to_vmem [thread:$0]  %s0, 128, %s26, [#allocation3]
    $region5: #{tpu_custom_call.1} parent=1 // pred_fallthru
      _
    // Predicated region
    $region6: #{tpu_custom_call.1} parent=1 // pred_check
      _
    $region7: #{tpu_custom_call.1} parent=1 // pred_check_branch
      %30 = sbr.rel (0) target = $region9
    $region8: #{tpu_custom_call.1} parent=1 // pred_region
      %s32 = ssub.s32 2048, 2048
      %33 = vsyncadd [#allocation6], %s32
      %s34 = sshll.u32 [#allocation5], 4
      %s35 = int_to_ptr.vmem [resolvable:$true] %s34
      %40 = dma.hbm_to_vmem [thread:$0]  %s1, 2048, %s35, [#allocation6], 128, 128, 8
    $region9: #{tpu_custom_call.1} parent=1 // pred_fallthru
      _
    // Predicated region
    $region10: #{tpu_custom_call.1} parent=1 // pred_check
      _
    $region11: #{tpu_custom_call.1} parent=1 // pred_check_branch
      %42 = sbr.rel (0) target = $region13
    $region12: #{tpu_custom_call.1} parent=1 // pred_region
      %s44 = ssub.s32 2048, 2048
      %45 = vsyncadd [#allocation6], %s44
      %s46 = sshll.u32 [#allocation7], 4
      %s47 = int_to_ptr.vmem [resolvable:$true] %s46
      %52 = dma.hbm_to_vmem [thread:$0]  %s2, 2048, %s47, [#allocation6], 128, 128, 8
    $region13: #{tpu_custom_call.1} parent=1 // pred_fallthru
      _
    // Predicated region
    $region14: #{tpu_custom_call.1} parent=1 // pred_check
      _
    $region15: #{tpu_custom_call.1} parent=1 // pred_check_branch
      %54 = sbr.rel (0) target = $region17
    $region16: #{tpu_custom_call.1} parent=1 // pred_region
      %s56 = ssub.s32 2048, 2048
      %57 = vsyncadd [#allocation9], %s56
      %s58 = sshll.u32 [#allocation8], 4
      %s59 = int_to_ptr.vmem [resolvable:$true] %s58
      %64 = dma.hbm_to_vmem [thread:$0]  %s3, 2048, %s59, [#allocation9], 128, 128, 8
    $region17: #{tpu_custom_call.1} parent=1 // pred_fallthru
      _
    // Predicated region
    $region18: #{tpu_custom_call.1} parent=1 // pred_check
      _
    $region19: #{tpu_custom_call.1} parent=1 // pred_check_branch
      %66 = sbr.rel (0) target = $region21
    $region20: #{tpu_custom_call.1} parent=1 // pred_region
      _
    $region21: #{tpu_custom_call.1} parent=1 // pred_fallthru
      _
    // Predicated region
    $region22: #{tpu_custom_call.1} parent=1 // pred_check
      _
    $region23: #{tpu_custom_call.1} parent=1 // pred_check_branch
      %68 = sbr.rel (0) target = $region25
    $region24: #{tpu_custom_call.1} parent=1 // pred_region
      _
    $region25: #{tpu_custom_call.1} parent=1 // pred_fallthru
      _
    // Predicated region
    $region26: #{tpu_custom_call.1} parent=1 // pred_check
      _
    $region27: #{tpu_custom_call.1} parent=1 // pred_check_branch
      %70 = sbr.rel (0) target = $region29
    $region28: #{tpu_custom_call.1} parent=1 // pred_region
      _
    $region29: #{tpu_custom_call.1} parent=1 // pred_fallthru
      _
    // Predicated region
    $region30: #{tpu_custom_call.1} parent=1 // pred_check
      _
    $region31: #{tpu_custom_call.1} parent=1 // pred_check_branch
      %72 = sbr.rel (0) target = $region33
    $region32: #{tpu_custom_call.1} parent=1 // pred_region
      %73 = dma.done [#allocation3], 128
    $region33: #{tpu_custom_call.1} parent=1 // pred_fallthru
      _
    // Predicated region
    $region34: #{tpu_custom_call.1} parent=1 // pred_check
      _
    $region35: #{tpu_custom_call.1} parent=1 // pred_check_branch
      %75 = sbr.rel (0) target = $region37
    $region36: #{tpu_custom_call.1} parent=1 // pred_region
      %76 = dma.done [#allocation6], 2048
    $region37: #{tpu_custom_call.1} parent=1 // pred_fallthru
      _
    // Predicated region
    $region38: #{tpu_custom_call.1} parent=1 // pred_check
      _
    $region39: #{tpu_custom_call.1} parent=1 // pred_check_branch
      %78 = sbr.rel (0) target = $region41
    $region40: #{tpu_custom_call.1} parent=1 // pred_region
      %79 = dma.done [#allocation6], 2048
    $region41: #{tpu_custom_call.1} parent=1 // pred_fallthru
      _
    // Predicated region
    $region42: #{tpu_custom_call.1} parent=1 // pred_check
      _
    $region43: #{tpu_custom_call.1} parent=1 // pred_check_branch
      %81 = sbr.rel (0) target = $region45
    $region44: #{tpu_custom_call.1} parent=1 // pred_region
      %82 = dma.done [#allocation9], 2048
    $region45: #{tpu_custom_call.1} parent=1 // pred_fallthru
      _
    %v83 = vld [vmem:[#allocation5] sm:$0xff]
    %v84 = vld [vmem:[#allocation5 + $0x8] sm:$0xff]
    %v85 = vld [vmem:[#allocation5 + $0x10] sm:$0xff]
    %v86 = vld [vmem:[#allocation5 + $0x18] sm:$0xff]
    %v87 = vld [vmem:[#allocation5 + $0x20] sm:$0xff]
    %v88 = vld [vmem:[#allocation5 + $0x28] sm:$0xff]
    %v89 = vld [vmem:[#allocation5 + $0x30] sm:$0xff]
    %v90 = vld [vmem:[#allocation5 + $0x38] sm:$0xff]
    %v91 = vld [vmem:[#allocation5 + $0x40] sm:$0xff]
    %v92 = vld [vmem:[#allocation5 + $0x48] sm:$0xff]
    %v93 = vld [vmem:[#allocation5 + $0x50] sm:$0xff]
    %v94 = vld [vmem:[#allocation5 + $0x58] sm:$0xff]
    %v95 = vld [vmem:[#allocation5 + $0x60] sm:$0xff]
    %v96 = vld [vmem:[#allocation5 + $0x68] sm:$0xff]
    %v97 = vld [vmem:[#allocation5 + $0x70] sm:$0xff]
    %v98 = vld [vmem:[#allocation5 + $0x78] sm:$0xff]
    %v99 = vld [vmem:[#allocation8] sm:$0xff]
    %v100 = vld [vmem:[#allocation8 + $0x8] sm:$0xff]
    %v101 = vld [vmem:[#allocation8 + $0x10] sm:$0xff]
    %v102 = vld [vmem:[#allocation8 + $0x18] sm:$0xff]
    %v103 = vld [vmem:[#allocation8 + $0x20] sm:$0xff]
    %v104 = vld [vmem:[#allocation8 + $0x28] sm:$0xff]
    %v105 = vld [vmem:[#allocation8 + $0x30] sm:$0xff]
    %v106 = vld [vmem:[#allocation8 + $0x38] sm:$0xff]
    %v107 = vld [vmem:[#allocation8 + $0x40] sm:$0xff]
    %v108 = vld [vmem:[#allocation8 + $0x48] sm:$0xff]
    %v109 = vld [vmem:[#allocation8 + $0x50] sm:$0xff]
    %v110 = vld [vmem:[#allocation8 + $0x58] sm:$0xff]
    %v111 = vld [vmem:[#allocation8 + $0x60] sm:$0xff]
    %v112 = vld [vmem:[#allocation8 + $0x68] sm:$0xff]
    %v113 = vld [vmem:[#allocation8 + $0x70] sm:$0xff]
    %v114 = vld [vmem:[#allocation8 + $0x78] sm:$0xff]
    %v115 = vld [vmem:[#allocation7] sm:$0xff]
    %v116 = vld [vmem:[#allocation7 + $0x8] sm:$0xff]
    %v117 = vld [vmem:[#allocation7 + $0x10] sm:$0xff]
    %v118 = vld [vmem:[#allocation7 + $0x18] sm:$0xff]
    %v119 = vld [vmem:[#allocation7 + $0x20] sm:$0xff]
    %v120 = vld [vmem:[#allocation7 + $0x28] sm:$0xff]
    %v121 = vld [vmem:[#allocation7 + $0x30] sm:$0xff]
    %v122 = vld [vmem:[#allocation7 + $0x38] sm:$0xff]
    %v123 = vld [vmem:[#allocation7 + $0x40] sm:$0xff]
    %v124 = vld [vmem:[#allocation7 + $0x48] sm:$0xff]
    %v125 = vld [vmem:[#allocation7 + $0x50] sm:$0xff]
    %v126 = vld [vmem:[#allocation7 + $0x58] sm:$0xff]
    %v127 = vld [vmem:[#allocation7 + $0x60] sm:$0xff]
    %v128 = vld [vmem:[#allocation7 + $0x68] sm:$0xff]
    %v129 = vld [vmem:[#allocation7 + $0x70] sm:$0xff]
    %v130 = vld [vmem:[#allocation7 + $0x78] sm:$0xff]
    %v131 = vmax.f32 %v115, 0.0
    %v132 = vmax.f32 %v116, 0.0
    %v133 = vmax.f32 %v117, 0.0
    %v134 = vmax.f32 %v118, 0.0
    %v135 = vmax.f32 %v119, 0.0
    %v136 = vmax.f32 %v120, 0.0
    %v137 = vmax.f32 %v121, 0.0
    %v138 = vmax.f32 %v122, 0.0
    %v139 = vmax.f32 %v123, 0.0
    %v140 = vmax.f32 %v124, 0.0
    %v141 = vmax.f32 %v125, 0.0
    %v142 = vmax.f32 %v126, 0.0
    %v143 = vmax.f32 %v127, 0.0
    %v144 = vmax.f32 %v128, 0.0
    %v145 = vmax.f32 %v129, 0.0
    %v146 = vmax.f32 %v130, 0.0
    %v147 = vand.u32 2147483647, %v115
    %v148 = vand.u32 2147483647, %v116
    %v149 = vand.u32 2147483647, %v117
    %v150 = vand.u32 2147483647, %v118
    %v151 = vand.u32 2147483647, %v119
    %v152 = vand.u32 2147483647, %v120
    %v153 = vand.u32 2147483647, %v121
    %v154 = vand.u32 2147483647, %v122
    %v155 = vand.u32 2147483647, %v123
    %v156 = vand.u32 2147483647, %v124
    %v157 = vand.u32 2147483647, %v125
    %v158 = vand.u32 2147483647, %v126
    %v159 = vand.u32 2147483647, %v127
    %v160 = vand.u32 2147483647, %v128
    %v161 = vand.u32 2147483647, %v129
    %v162 = vand.u32 2147483647, %v130
    %v163 = vsub.f32 0.0, %v147
    %v164 = vsub.f32 0.0, %v148
    %v165 = vsub.f32 0.0, %v149
    %v166 = vsub.f32 0.0, %v150
    %v167 = vsub.f32 0.0, %v151
    %v168 = vsub.f32 0.0, %v152
    %v169 = vsub.f32 0.0, %v153
    %v170 = vsub.f32 0.0, %v154
    %v171 = vsub.f32 0.0, %v155
    %v172 = vsub.f32 0.0, %v156
    %v173 = vsub.f32 0.0, %v157
    %v174 = vsub.f32 0.0, %v158
    %v175 = vsub.f32 0.0, %v159
    %v176 = vsub.f32 0.0, %v160
    %v177 = vsub.f32 0.0, %v161
    %v178 = vsub.f32 0.0, %v162
    %v179 = vmul.f32 %v163, 1.442695
    %v180 = vpow.pop %v179
    %v181 = vmul.f32 %v164, 1.442695
    %v182 = vpow.pop %v181
    %v183 = vmul.f32 %v165, 1.442695
    %v184 = vpow.pop %v183
    %v185 = vmul.f32 %v166, 1.442695
    %v186 = vpow.pop %v185
    %v187 = vmul.f32 %v167, 1.442695
    %v188 = vpow.pop %v187
    %v189 = vmul.f32 %v168, 1.442695
    %v190 = vpow.pop %v189
    %v191 = vmul.f32 %v169, 1.442695
    %v192 = vpow.pop %v191
    %v193 = vmul.f32 %v170, 1.442695
    %v194 = vpow.pop %v193
    %v195 = vmul.f32 %v171, 1.442695
    %v196 = vpow.pop %v195
    %v197 = vmul.f32 %v172, 1.442695
    %v198 = vpow.pop %v197
    %v199 = vmul.f32 %v173, 1.442695
    %v200 = vpow.pop %v199
    %v201 = vmul.f32 %v174, 1.442695
    %v202 = vpow.pop %v201
    %v203 = vmul.f32 %v175, 1.442695
    %v204 = vpow.pop %v203
    %v205 = vmul.f32 %v176, 1.442695
    %v206 = vpow.pop %v205
    %v207 = vmul.f32 %v177, 1.442695
    %v208 = vpow.pop %v207
    %v209 = vmul.f32 %v178, 1.442695
    %v210 = vpow.pop %v209
    %v211 = vadd.f32 %v180, 1.0
    %v212 = vlog2.pop %v211
    %v213 = vmul.f32 %v212, 0.6931472
    %v214 = vmul.f32 -0.5, %v180
    %v215 = vadd.f32 %v214, 1.0
    %v216 = vmul.f32 %v215, %v180
    %v217 = vand.u32 2147483647, %v180
    %vm218 = vcmp.lt.f32.partialorder %v217, 0.0004427343
    %v219 = vsel %vm218, %v216, %v213
    %v220 = vadd.f32 %v182, 1.0
    %v221 = vlog2.pop %v220
    %v222 = vmul.f32 %v221, 0.6931472
    %v223 = vmul.f32 -0.5, %v182
    %v224 = vadd.f32 %v223, 1.0
    %v225 = vmul.f32 %v224, %v182
    %v226 = vand.u32 2147483647, %v182
    %vm227 = vcmp.lt.f32.partialorder %v226, 0.0004427343
    %v228 = vsel %vm227, %v225, %v222
    %v229 = vadd.f32 %v184, 1.0
    %v230 = vlog2.pop %v229
    %v231 = vmul.f32 %v230, 0.6931472
    %v232 = vmul.f32 -0.5, %v184
    %v233 = vadd.f32 %v232, 1.0
    %v234 = vmul.f32 %v233, %v184
    %v235 = vand.u32 2147483647, %v184
    %vm236 = vcmp.lt.f32.partialorder %v235, 0.0004427343
    %v237 = vsel %vm236, %v234, %v231
    %v238 = vadd.f32 %v186, 1.0
    %v239 = vlog2.pop %v238
    %v240 = vmul.f32 %v239, 0.6931472
    %v241 = vmul.f32 -0.5, %v186
    %v242 = vadd.f32 %v241, 1.0
    %v243 = vmul.f32 %v242, %v186
    %v244 = vand.u32 2147483647, %v186
    %vm245 = vcmp.lt.f32.partialorder %v244, 0.0004427343
    %v246 = vsel %vm245, %v243, %v240
    %v247 = vadd.f32 %v188, 1.0
    %v248 = vlog2.pop %v247
    %v249 = vmul.f32 %v248, 0.6931472
    %v250 = vmul.f32 -0.5, %v188
    %v251 = vadd.f32 %v250, 1.0
    %v252 = vmul.f32 %v251, %v188
    %v253 = vand.u32 2147483647, %v188
    %vm254 = vcmp.lt.f32.partialorder %v253, 0.0004427343
    %v255 = vsel %vm254, %v252, %v249
    %v256 = vadd.f32 %v190, 1.0
    %v257 = vlog2.pop %v256
    %v258 = vmul.f32 %v257, 0.6931472
    %v259 = vmul.f32 -0.5, %v190
    %v260 = vadd.f32 %v259, 1.0
    %v261 = vmul.f32 %v260, %v190
    %v262 = vand.u32 2147483647, %v190
    %vm263 = vcmp.lt.f32.partialorder %v262, 0.0004427343
    %v264 = vsel %vm263, %v261, %v258
    %v265 = vadd.f32 %v192, 1.0
    %v266 = vlog2.pop %v265
    %v267 = vmul.f32 %v266, 0.6931472
    %v268 = vmul.f32 -0.5, %v192
    %v269 = vadd.f32 %v268, 1.0
    %v270 = vmul.f32 %v269, %v192
    %v271 = vand.u32 2147483647, %v192
    %vm272 = vcmp.lt.f32.partialorder %v271, 0.0004427343
    %v273 = vsel %vm272, %v270, %v267
    %v274 = vadd.f32 %v194, 1.0
    %v275 = vlog2.pop %v274
    %v276 = vmul.f32 %v275, 0.6931472
    %v277 = vmul.f32 -0.5, %v194
    %v278 = vadd.f32 %v277, 1.0
    %v279 = vmul.f32 %v278, %v194
    %v280 = vand.u32 2147483647, %v194
    %vm281 = vcmp.lt.f32.partialorder %v280, 0.0004427343
    %v282 = vsel %vm281, %v279, %v276
    %v283 = vadd.f32 %v196, 1.0
    %v284 = vlog2.pop %v283
    %v285 = vmul.f32 %v284, 0.6931472
    %v286 = vmul.f32 -0.5, %v196
    %v287 = vadd.f32 %v286, 1.0
    %v288 = vmul.f32 %v287, %v196
    %v289 = vand.u32 2147483647, %v196
    %vm290 = vcmp.lt.f32.partialorder %v289, 0.0004427343
    %v291 = vsel %vm290, %v288, %v285
    %v292 = vadd.f32 %v198, 1.0
    %v293 = vlog2.pop %v292
    %v294 = vmul.f32 %v293, 0.6931472
    %v295 = vmul.f32 -0.5, %v198
    %v296 = vadd.f32 %v295, 1.0
    %v297 = vmul.f32 %v296, %v198
    %v298 = vand.u32 2147483647, %v198
    %vm299 = vcmp.lt.f32.partialorder %v298, 0.0004427343
    %v300 = vsel %vm299, %v297, %v294
    %v301 = vadd.f32 %v200, 1.0
    %v302 = vlog2.pop %v301
    %v303 = vmul.f32 %v302, 0.6931472
    %v304 = vmul.f32 -0.5, %v200
    %v305 = vadd.f32 %v304, 1.0
    %v306 = vmul.f32 %v305, %v200
    %v307 = vand.u32 2147483647, %v200
    %vm308 = vcmp.lt.f32.partialorder %v307, 0.0004427343
    %v309 = vsel %vm308, %v306, %v303
    %v310 = vadd.f32 %v202, 1.0
    %v311 = vlog2.pop %v310
    %v312 = vmul.f32 %v311, 0.6931472
    %v313 = vmul.f32 -0.5, %v202
    %v314 = vadd.f32 %v313, 1.0
    %v315 = vmul.f32 %v314, %v202
    %v316 = vand.u32 2147483647, %v202
    %vm317 = vcmp.lt.f32.partialorder %v316, 0.0004427343
    %v318 = vsel %vm317, %v315, %v312
    %v319 = vadd.f32 %v204, 1.0
    %v320 = vlog2.pop %v319
    %v321 = vmul.f32 %v320, 0.6931472
    %v322 = vmul.f32 -0.5, %v204
    %v323 = vadd.f32 %v322, 1.0
    %v324 = vmul.f32 %v323, %v204
    %v325 = vand.u32 2147483647, %v204
    %vm326 = vcmp.lt.f32.partialorder %v325, 0.0004427343
    %v327 = vsel %vm326, %v324, %v321
    %v328 = vadd.f32 %v206, 1.0
    %v329 = vlog2.pop %v328
    %v330 = vmul.f32 %v329, 0.6931472
    %v331 = vmul.f32 -0.5, %v206
    %v332 = vadd.f32 %v331, 1.0
    %v333 = vmul.f32 %v332, %v206
    %v334 = vand.u32 2147483647, %v206
    %vm335 = vcmp.lt.f32.partialorder %v334, 0.0004427343
    %v336 = vsel %vm335, %v333, %v330
    %v337 = vadd.f32 %v208, 1.0
    %v338 = vlog2.pop %v337
    %v339 = vmul.f32 %v338, 0.6931472
    %v340 = vmul.f32 -0.5, %v208
    %v341 = vadd.f32 %v340, 1.0
    %v342 = vmul.f32 %v341, %v208
    %v343 = vand.u32 2147483647, %v208
    %vm344 = vcmp.lt.f32.partialorder %v343, 0.0004427343
    %v345 = vsel %vm344, %v342, %v339
    %v346 = vadd.f32 %v210, 1.0
    %v347 = vlog2.pop %v346
    %v348 = vmul.f32 %v347, 0.6931472
    %v349 = vmul.f32 -0.5, %v210
    %v350 = vadd.f32 %v349, 1.0
    %v351 = vmul.f32 %v350, %v210
    %v352 = vand.u32 2147483647, %v210
    %vm353 = vcmp.lt.f32.partialorder %v352, 0.0004427343
    %v354 = vsel %vm353, %v351, %v348
    %v355 = vadd.f32 %v131, %v219
    %v356 = vadd.f32 %v132, %v228
    %v357 = vadd.f32 %v133, %v237
    %v358 = vadd.f32 %v134, %v246
    %v359 = vadd.f32 %v135, %v255
    %v360 = vadd.f32 %v136, %v264
    %v361 = vadd.f32 %v137, %v273
    %v362 = vadd.f32 %v138, %v282
    %v363 = vadd.f32 %v139, %v291
    %v364 = vadd.f32 %v140, %v300
    %v365 = vadd.f32 %v141, %v309
    %v366 = vadd.f32 %v142, %v318
    %v367 = vadd.f32 %v143, %v327
    %v368 = vadd.f32 %v144, %v336
    %v369 = vadd.f32 %v145, %v345
    %v370 = vadd.f32 %v146, %v354
    %v371 = vmul.f32 %v355, %v99
    %v372 = vmul.f32 %v356, %v100
    %v373 = vmul.f32 %v357, %v101
    %v374 = vmul.f32 %v358, %v102
    %v375 = vmul.f32 %v359, %v103
    %v376 = vmul.f32 %v360, %v104
    %v377 = vmul.f32 %v361, %v105
    %v378 = vmul.f32 %v362, %v106
    %v379 = vmul.f32 %v363, %v107
    %v380 = vmul.f32 %v364, %v108
    %v381 = vmul.f32 %v365, %v109
    %v382 = vmul.f32 %v366, %v110
    %v383 = vmul.f32 %v367, %v111
    %v384 = vmul.f32 %v368, %v112
    %v385 = vmul.f32 %v369, %v113
    %v386 = vmul.f32 %v370, %v114
    %v387 = vadd.f32 %v83, %v371
    %v388 = vadd.f32 %v84, %v372
    %v389 = vadd.f32 %v85, %v373
    %v390 = vadd.f32 %v86, %v374
    %v391 = vadd.f32 %v87, %v375
    %v392 = vadd.f32 %v88, %v376
    %v393 = vadd.f32 %v89, %v377
    %v394 = vadd.f32 %v90, %v378
    %v395 = vadd.f32 %v91, %v379
    %v396 = vadd.f32 %v92, %v380
    %v397 = vadd.f32 %v93, %v381
    %v398 = vadd.f32 %v94, %v382
    %v399 = vadd.f32 %v95, %v383
    %v400 = vadd.f32 %v96, %v384
    %v401 = vadd.f32 %v97, %v385
    %v402 = vadd.f32 %v98, %v386
    %v403 = vld [vmem:[%s4] sm:$0x1]
    %v404 = vld [vmem:[%s6] sm:$0x1]
    %v405 = vld [vmem:[%s5] sm:$0x1]
    %v406 = vmax.f32 %v405, 0.0
    %v407 = vand.u32 2147483647, %v405
    %v408 = vsub.f32 0.0, %v407
    %v409 = vmul.f32 %v408, 1.442695
    %v410 = vpow.pop %v409
    %v411 = vadd.f32 %v410, 1.0
    %v412 = vlog2.pop %v411
    %v413 = vmul.f32 %v412, 0.6931472
    %v414 = vmul.f32 -0.5, %v410
    %v415 = vadd.f32 %v414, 1.0
    %v416 = vmul.f32 %v415, %v410
    %v417 = vand.u32 2147483647, %v410
    %vm418 = vcmp.lt.f32.partialorder %v417, 0.0004427343
    %v419 = vsel %vm418, %v416, %v413
    %v420 = vadd.f32 %v406, %v419
    %v421 = vmul.f32 %v420, %v404
    %v422 = vadd.f32 %v403, %v421
    %v423 = vld [vmem:[#allocation2] sm:$0xff]
    %v425 = vlaneseq
    %v426 = vshrl.u32 %v425, 7
    %v427 = vsub.s32 0, %v426
    %v428 = vrot.slane %v422, %v427
    %430 = vmatprep.subr.mxu0 0.0
    %431 = vmatpush1.xpose.msra.mxu0 %v387
    %432 = vmatprep.subr.mxu0 0.0
    %433 = vmatpush1.xpose.msra.mxu0 %v388
    %434 = vmatprep.subr.mxu0 0.0
    %435 = vmatpush1.xpose.msra.mxu0 %v389
    %436 = vmatprep.subr.mxu0 0.0
    %437 = vmatpush1.xpose.msra.mxu0 %v390
    %438 = vmatprep.subr.mxu0 0.0
    %439 = vmatpush1.xpose.msra.mxu0 %v391
    %440 = vmatprep.subr.mxu0 0.0
    %441 = vmatpush1.xpose.msra.mxu0 %v392
    %442 = vmatprep.subr.mxu0 0.0
    %443 = vmatpush1.xpose.msra.mxu0 %v393
    %444 = vmatprep.subr.mxu0 0.0
    %445 = vmatpush1.xpose.msra.mxu0 %v394
    %446 = vmatprep.subr.mxu0 0.0
    %447 = vmatpush1.xpose.msra.mxu0 %v395
    %448 = vmatprep.subr.mxu0 0.0
    %449 = vmatpush1.xpose.msra.mxu0 %v396
    %450 = vmatprep.subr.mxu0 0.0
    %451 = vmatpush1.xpose.msra.mxu0 %v397
    %452 = vmatprep.subr.mxu0 0.0
    %453 = vmatpush1.xpose.msra.mxu0 %v398
    %454 = vmatprep.subr.mxu0 0.0
    %455 = vmatpush1.xpose.msra.mxu0 %v399
    %456 = vmatprep.subr.mxu0 0.0
    %457 = vmatpush1.xpose.msra.mxu0 %v400
    %458 = vmatprep.subr.mxu0 0.0
    %459 = vmatpush1.xpose.msra.mxu0 %v401
    %460 = vmatprep.subr.mxu0 0.0
    %461 = vmatpush1.xpose.msra.mxu0 %v402
    %462 = vmatprep.subr.mxu0 0.0
    %463 = vmatpush1.xpose.msra.mxu0 0.0
    %464 = vmatprep.subr.mxu0 0.0
    %465 = vmatpush1.xpose.msra.mxu0 0.0
    %466 = vmatprep.subr.mxu0 0.0
    %467 = vmatpush1.xpose.msra.mxu0 0.0
    %468 = vmatprep.subr.mxu0 0.0
    %469 = vmatpush1.xpose.msra.mxu0 0.0
    %470 = vmatprep.subr.mxu0 0.0
    %471 = vmatpush1.xpose.msra.mxu0 0.0
    %472 = vmatprep.subr.mxu0 0.0
    %473 = vmatpush1.xpose.msra.mxu0 0.0
    %474 = vmatprep.subr.mxu0 0.0
    %475 = vmatpush1.xpose.msra.mxu0 0.0
    %476 = vmatprep.subr.mxu0 0.0
    %477 = vmatpush1.xpose.msra.mxu0 0.0
    %478 = vmatprep.subr.mxu0 0.0
    %479 = vmatpush1.xpose.msra.mxu0 0.0
    %480 = vmatprep.subr.mxu0 0.0
    %481 = vmatpush1.xpose.msra.mxu0 0.0
    %482 = vmatprep.subr.mxu0 0.0
    %483 = vmatpush1.xpose.msra.mxu0 0.0
    %484 = vmatprep.subr.mxu0 0.0
    %485 = vmatpush1.xpose.msra.mxu0 0.0
    %486 = vmatprep.subr.mxu0 0.0
    %487 = vmatpush1.xpose.msra.mxu0 0.0
    %488 = vmatprep.subr.mxu0 0.0
    %489 = vmatpush1.xpose.msra.mxu0 0.0
    %490 = vmatprep.subr.mxu0 0.0
    %491 = vmatpush1.xpose.msra.mxu0 0.0
    %492 = vmatprep.subr.mxu0 0.0
    %493 = vmatpush1.xpose.msra.mxu0 0.0
    %494 = vmatprep.mubr.f32.mxu0 0.0
    %495 = vmatmul.mubr.f32.gmra.mrb[0].mxu0 %v423
    %v496 = vpop.f32.mrb[0].mxu0
    %v497 = vadd.f32 %v428, %v496
    %v498 = vpop.f32.mrb[0].mxu0
    %499 = vdwg.mxu0
    %500 = vst [vmem:[#allocation10] sm:$0xff] %v497
    %s501 = smul.u32 0, 128
    %v502 = vlaneseq
    %v503 = vshrl.u32 %v502, 7
    %v504 = vadd.s32 %v503, 8
    %v505 = vadd.s32 %v503, 16
    %v506 = vadd.s32 %v503, 24
    %v507 = vadd.s32 %v503, 32
    %v508 = vadd.s32 %v503, 40
    %v509 = vadd.s32 %v503, 48
    %v510 = vadd.s32 %v503, 56
    %v511 = vadd.s32 %v503, 64
    %v512 = vadd.s32 %v503, 72
    %v513 = vadd.s32 %v503, 80
    %v514 = vadd.s32 %v503, 88
    %v515 = vadd.s32 %v503, 96
    %v516 = vadd.s32 %v503, 104
    %v517 = vadd.s32 %v503, 112
    %v518 = vadd.s32 %v503, 120
    %v519 = vstv %s501
    %v520 = vadd.s32 %v503, %v519
    %v521 = vadd.s32 %v504, %v519
    %v522 = vadd.s32 %v505, %v519
    %v523 = vadd.s32 %v506, %v519
    %v524 = vadd.s32 %v507, %v519
    %v525 = vadd.s32 %v508, %v519
    %v526 = vadd.s32 %v509, %v519
    %v527 = vadd.s32 %v510, %v519
    %v528 = vadd.s32 %v511, %v519
    %v529 = vadd.s32 %v512, %v519
    %v530 = vadd.s32 %v513, %v519
    %v531 = vadd.s32 %v514, %v519
    %v532 = vadd.s32 %v515, %v519
    %v533 = vadd.s32 %v516, %v519
    %v534 = vadd.s32 %v517, %v519
    %v535 = vadd.s32 %v518, %v519
    %v536 = vlaneseq
    %v537 = vand.u32 %v536, 127
    %vm538 = vcmp.lt.s32.totalorder %v520, 16
    %vm539 = vcmp.lt.s32.totalorder %v521, 16
    %vm540 = vcmp.lt.s32.totalorder %v522, 16
    %vm541 = vcmp.lt.s32.totalorder %v523, 16
    %vm542 = vcmp.lt.s32.totalorder %v524, 16
    %vm543 = vcmp.lt.s32.totalorder %v525, 16
    %vm544 = vcmp.lt.s32.totalorder %v526, 16
    %vm545 = vcmp.lt.s32.totalorder %v527, 16
    %vm546 = vcmp.lt.s32.totalorder %v528, 16
    %vm547 = vcmp.lt.s32.totalorder %v529, 16
    %vm548 = vcmp.lt.s32.totalorder %v530, 16
    %vm549 = vcmp.lt.s32.totalorder %v531, 16
    %vm550 = vcmp.lt.s32.totalorder %v532, 16
    %vm551 = vcmp.lt.s32.totalorder %v533, 16
    %vm552 = vcmp.lt.s32.totalorder %v534, 16
    %vm553 = vcmp.lt.s32.totalorder %v535, 16
    %vm554 = vcmp.lt.s32.totalorder %v537, 32
    %vm555 = vmand %vm538, %vm554
    %vm556 = vmand %vm539, %vm554
    %vm557 = vmand %vm540, %vm554
    %vm558 = vmand %vm541, %vm554
    %vm559 = vmand %vm542, %vm554
    %vm560 = vmand %vm543, %vm554
    %vm561 = vmand %vm544, %vm554
    %vm562 = vmand %vm545, %vm554
    %vm563 = vmand %vm546, %vm554
    %vm564 = vmand %vm547, %vm554
    %vm565 = vmand %vm548, %vm554
    %vm566 = vmand %vm549, %vm554
    %vm567 = vmand %vm550, %vm554
    %vm568 = vmand %vm551, %vm554
    %vm569 = vmand %vm552, %vm554
    %vm570 = vmand %vm553, %vm554
    %v571 = vlog2.pop %v355
    %v572 = vmul.f32 %v571, 0.6931472
    %v573 = vlog2.pop %v356
    %v574 = vmul.f32 %v573, 0.6931472
    %v575 = vlog2.pop %v357
    %v576 = vmul.f32 %v575, 0.6931472
    %v577 = vlog2.pop %v358
    %v578 = vmul.f32 %v577, 0.6931472
    %v579 = vlog2.pop %v359
    %v580 = vmul.f32 %v579, 0.6931472
    %v581 = vlog2.pop %v360
    %v582 = vmul.f32 %v581, 0.6931472
    %v583 = vlog2.pop %v361
    %v584 = vmul.f32 %v583, 0.6931472
    %v585 = vlog2.pop %v362
    %v586 = vmul.f32 %v585, 0.6931472
    %v587 = vlog2.pop %v363
    %v588 = vmul.f32 %v587, 0.6931472
    %v589 = vlog2.pop %v364
    %v590 = vmul.f32 %v589, 0.6931472
    %v591 = vlog2.pop %v365
    %v592 = vmul.f32 %v591, 0.6931472
    %v593 = vlog2.pop %v366
    %v594 = vmul.f32 %v593, 0.6931472
    %v595 = vlog2.pop %v367
    %v596 = vmul.f32 %v595, 0.6931472
    %v597 = vlog2.pop %v368
    %v598 = vmul.f32 %v597, 0.6931472
    %v599 = vlog2.pop %v369
    %v600 = vmul.f32 %v599, 0.6931472
    %v601 = vlog2.pop %v370
    %v602 = vmul.f32 %v601, 0.6931472
    %v603 = vsub.f32 -0.9189385, %v572
    %v604 = vsub.f32 -0.9189385, %v574
    %v605 = vsub.f32 -0.9189385, %v576
    %v606 = vsub.f32 -0.9189385, %v578
    %v607 = vsub.f32 -0.9189385, %v580
    %v608 = vsub.f32 -0.9189385, %v582
    %v609 = vsub.f32 -0.9189385, %v584
    %v610 = vsub.f32 -0.9189385, %v586
    %v611 = vsub.f32 -0.9189385, %v588
    %v612 = vsub.f32 -0.9189385, %v590
    %v613 = vsub.f32 -0.9189385, %v592
    %v614 = vsub.f32 -0.9189385, %v594
    %v615 = vsub.f32 -0.9189385, %v596
    %v616 = vsub.f32 -0.9189385, %v598
    %v617 = vsub.f32 -0.9189385, %v600
    %v618 = vsub.f32 -0.9189385, %v602
    %v619 = vmul.f32 %v99, 0.5
    %v620 = vmul.f32 %v100, 0.5
    %v621 = vmul.f32 %v101, 0.5
    %v622 = vmul.f32 %v102, 0.5
    %v623 = vmul.f32 %v103, 0.5
    %v624 = vmul.f32 %v104, 0.5
    %v625 = vmul.f32 %v105, 0.5
    %v626 = vmul.f32 %v106, 0.5
    %v627 = vmul.f32 %v107, 0.5
    %v628 = vmul.f32 %v108, 0.5
    %v629 = vmul.f32 %v109, 0.5
    %v630 = vmul.f32 %v110, 0.5
    %v631 = vmul.f32 %v111, 0.5
    %v632 = vmul.f32 %v112, 0.5
    %v633 = vmul.f32 %v113, 0.5
    %v634 = vmul.f32 %v114, 0.5
    %v635 = vmul.f32 %v619, %v99
    %v636 = vmul.f32 %v620, %v100
    %v637 = vmul.f32 %v621, %v101
    %v638 = vmul.f32 %v622, %v102
    %v639 = vmul.f32 %v623, %v103
    %v640 = vmul.f32 %v624, %v104
    %v641 = vmul.f32 %v625, %v105
    %v642 = vmul.f32 %v626, %v106
    %v643 = vmul.f32 %v627, %v107
    %v644 = vmul.f32 %v628, %v108
    %v645 = vmul.f32 %v629, %v109
    %v646 = vmul.f32 %v630, %v110
    %v647 = vmul.f32 %v631, %v111
    %v648 = vmul.f32 %v632, %v112
    %v649 = vmul.f32 %v633, %v113
    %v650 = vmul.f32 %v634, %v114
    %v651 = vsub.f32 %v603, %v635
    %v652 = vsub.f32 %v604, %v636
    %v653 = vsub.f32 %v605, %v637
    %v654 = vsub.f32 %v606, %v638
    %v655 = vsub.f32 %v607, %v639
    %v656 = vsub.f32 %v608, %v640
    %v657 = vsub.f32 %v609, %v641
    %v658 = vsub.f32 %v610, %v642
    %v659 = vsub.f32 %v611, %v643
    %v660 = vsub.f32 %v612, %v644
    %v661 = vsub.f32 %v613, %v645
    %v662 = vsub.f32 %v614, %v646
    %v663 = vsub.f32 %v615, %v647
    %v664 = vsub.f32 %v616, %v648
    %v665 = vsub.f32 %v617, %v649
    %v666 = vsub.f32 %v618, %v650
    %v667 = vsel %vm555, %v651, 0.0
    %v668 = vsel %vm556, %v652, 0.0
    %v669 = vsel %vm557, %v653, 0.0
    %v670 = vsel %vm558, %v654, 0.0
    %v671 = vsel %vm559, %v655, 0.0
    %v672 = vsel %vm560, %v656, 0.0
    %v673 = vsel %vm561, %v657, 0.0
    %v674 = vsel %vm562, %v658, 0.0
    %v675 = vsel %vm563, %v659, 0.0
    %v676 = vsel %vm564, %v660, 0.0
    %v677 = vsel %vm565, %v661, 0.0
    %v678 = vsel %vm566, %v662, 0.0
    %v679 = vsel %vm567, %v663, 0.0
    %v680 = vsel %vm568, %v664, 0.0
    %v681 = vsel %vm569, %v665, 0.0
    %v682 = vsel %vm570, %v666, 0.0
    %v683 = vadd.f32 %v667, %v668
    %v684 = vadd.f32 %v683, %v669
    %v685 = vadd.f32 %v684, %v670
    %v686 = vadd.f32 %v685, %v671
    %v687 = vadd.f32 %v686, %v672
    %v688 = vadd.f32 %v687, %v673
    %v689 = vadd.f32 %v688, %v674
    %v690 = vadd.f32 %v689, %v675
    %v691 = vadd.f32 %v690, %v676
    %v692 = vadd.f32 %v691, %v677
    %v693 = vadd.f32 %v692, %v678
    %v694 = vadd.f32 %v693, %v679
    %v695 = vadd.f32 %v694, %v680
    %v696 = vadd.f32 %v695, %v681
    %v697 = vadd.f32 %v696, %v682
    %698 = vadd.xlane.f32.xlu0 %v697
    %v699 = vpop.xlane.xlu0 %698
    %v700 = vrot.slane %v699, 4
    %v701 = vadd.f32 %v699, %v700
    %v702 = vrot.slane %v701, 2
    %v703 = vadd.f32 %v701, %v702
    %v704 = vrot.slane %v703, 1
    %v705 = vadd.f32 %v703, %v704
    %s706 = vtos %v705
    %v707 = vadd.s32 %v537, %v519
    %vm708 = vcmp.lt.s32.totalorder %v707, 16
    %v709 = vlog2.pop %v420
    %v710 = vmul.f32 %v709, 0.6931472
    %v711 = vsub.f32 -0.9189385, %v710
    %v712 = vmul.f32 %v404, 0.5
    %v713 = vmul.f32 %v712, %v404
    %v714 = vsub.f32 %v711, %v713
    %v715 = vsel %vm708, %v714, 0.0
    %vm716 = vcmask 1040384
    %v717 = vsel %vm716, %v715, 0.0
    %718 = vadd.xlane.f32.xlu0 %v717
    %v719 = vpop.xlane.xlu0 %718
    %v720 = vrot.slane %v719, 4
    %v721 = vadd.f32 %v719, %v720
    %v722 = vrot.slane %v721, 2
    %v723 = vadd.f32 %v721, %v722
    %v724 = vrot.slane %v723, 1
    %v725 = vadd.f32 %v723, %v724
    %s726 = vtos %v725
    %p727 = scmp.eq.s32.totalorder 0, 0
    // Predicated region
    $region46: #{tpu_custom_call.1} parent=1 // pred_check
      %p728 = pneg %p727
    $region47: #{tpu_custom_call.1} parent=1 // pred_check_branch
      %730 = sbr.rel (%p728) target = $region49
    $region48: #{tpu_custom_call.1} parent=1 // pred_region
      %vm731 = vcmask 0
      %732 = vst.msk [vmem:[#allocation11] sm:$0x1] %vm731, 0.0
    $region49: #{tpu_custom_call.1} parent=1 // pred_fallthru
      _
    %v733 = vld [vmem:[#allocation11] sm:$0x1]
    %s734 = sadd.f32 %s706, %s726
    %v735 = vstv %s734
    %v736 = vadd.f32 %v733, %v735
    %vm737 = vcmask 0
    %738 = vst.msk [vmem:[#allocation11] sm:$0x1] %vm737, %v736
    // Predicated region
    $region50: #{tpu_custom_call.1} parent=1 // pred_check
      _
    $region51: #{tpu_custom_call.1} parent=1 // pred_check_branch
      %740 = sbr.rel (0) target = $region53
    $region52: #{tpu_custom_call.1} parent=1 // pred_region
      %s742 = ssub.s32 128, 128
      %743 = vsyncadd [#allocation4], %s742
      %s745 = sshll.u32 [#allocation10], 4
      %s746 = int_to_ptr.vmem [resolvable:$true] %s745
      %748 = dma.vmem_to_hbm [thread:$0]  %s746, 128, %s7, [#allocation4]
    $region53: #{tpu_custom_call.1} parent=1 // pred_fallthru
      _
    // Predicated region
    $region54: #{tpu_custom_call.1} parent=1 // pred_check
      _
    $region55: #{tpu_custom_call.1} parent=1 // pred_check_branch
      %750 = sbr.rel (0) target = $region57
    $region56: #{tpu_custom_call.1} parent=1 // pred_region
      %s752 = ssub.s32 16, 16
      %753 = vsyncadd [#allocation12], %s752
      %s755 = sshll.u32 [#allocation11], 4
      %s756 = int_to_ptr.vmem [resolvable:$true] %s755
      %758 = dma.vmem_to_hbm [thread:$0]  %s756, 16, %s8, [#allocation12]
    $region57: #{tpu_custom_call.1} parent=1 // pred_fallthru
      _
    // Predicated region
    $region58: #{tpu_custom_call.1} parent=1 // pred_check
      _
    $region59: #{tpu_custom_call.1} parent=1 // pred_check_branch
      %760 = sbr.rel (0) target = $region61
    $region60: #{tpu_custom_call.1} parent=1 // pred_region
      %761 = dma.done [#allocation4], 128
    $region61: #{tpu_custom_call.1} parent=1 // pred_fallthru
      _
    // Predicated region
    $region62: #{tpu_custom_call.1} parent=1 // pred_check
      _
    $region63: #{tpu_custom_call.1} parent=1 // pred_check_branch
      %763 = sbr.rel (0) target = $region65
    $region64: #{tpu_custom_call.1} parent=1 // pred_region
      %764 = dma.done [#allocation12], 16
    $region65: #{tpu_custom_call.1} parent=1 // pred_fallthru
      _
    %765 = vsyncpa [#allocation3], 1
    %766 = vsyncpa [#allocation6], 1
    %767 = vsyncpa [#allocation9], 1
    %768 = vsyncpa [#allocation4], 1
    %769 = vsyncpa [#allocation12], 1

</llo_original>
